<compile_context>
chip_gen: v7x
topology: tpu7x:2x2x1
jax: 0.10.0
libtpu: 0.0.40
codegen_flags: <defaults>
</compile_context>

<pallas_src>
import functools

import jax
import jax.numpy as jnp
from jax.experimental import pallas as pl
from jax.experimental.pallas import tpu as pltpu


def _threshold_kernel(thr_ref, x_ref, o_ref):
    # abs(ceil(x - threshold - 0.001)); exact PyTorch op order, done in f32.
    x = x_ref[...].astype(jnp.float32)
    thr = thr_ref[0]
    o_ref[...] = jnp.abs(jnp.ceil(x - thr - jnp.float32(0.001))).astype(o_ref.dtype)


@functools.partial(jax.jit, static_argnames=("block_rows",))
def _threshold_2d(x2d, thr, *, block_rows):
    rows, cols = x2d.shape
    grid = (pl.cdiv(rows, block_rows),)  # ragged last block is masked by Pallas
    return pl.pallas_call(
        _threshold_kernel,
        out_shape=jax.ShapeDtypeStruct((rows, cols), x2d.dtype),
        grid_spec=pltpu.PrefetchScalarGridSpec(
            num_scalar_prefetch=1,  # thr lives in SMEM -> no recompile per value
            grid=grid,
            in_specs=[pl.BlockSpec((block_rows, cols), lambda i, thr: (i, 0))],
            out_specs=pl.BlockSpec((block_rows, cols), lambda i, thr: (i, 0)),
        ),
        compiler_params=pltpu.CompilerParams(
            # Independent tiles: lets v7x shard the grid over both TensorCores;
            # harmless on single-TC v5e/v6e.
            dimension_semantics=("parallel",),
            # 4 MiB blocks x 2 buffers x (in + out) = 16 MiB; raise the scoped
            # limit so v5e's 16 MiB default doesn't reject it. 48 MiB is below
            # every generation's physical VMEM (64 MiB on v7x).
            vmem_limit_bytes=48 * 1024 * 1024,
        ),
    )(thr, x2d)


_COLS_MENU = (4096, 2048, 1024, 512, 256, 128)
_TARGET_BLOCK_BYTES = 4 * 1024 * 1024  # ~4 MiB per block


def _pick_cols(total):
    """Largest lane-dense width that divides total exactly (no padding)."""
    for c in _COLS_MENU:
        if total % c == 0:
            return c
    return None


def _pick_block_rows(rows, cols, itemsize):
    """Block height: ~4 MiB blocks, multiple of the sublane packing, shrunk by
    powers of two so the grid has >= 2 steps whenever the input is splittable
    (keeps both v7x TensorCores busy, small menu of values -> few recompiles)."""
    min_sublane = 8 * max(1, 4 // itemsize)  # 8 f32 / 16 bf16 / 32 int8
    if rows <= min_sublane:
        # Single full-height block (block dim == full array dim is allowed).
        return rows
    target_elems = _TARGET_BLOCK_BYTES // itemsize
    raw = max(1, (target_elems // cols) // min_sublane)
    block_rows = min_sublane * (1 << (raw.bit_length() - 1))
    while block_rows > min_sublane and pl.cdiv(rows, block_rows) < 2:
        block_rows //= 2
    return block_rows


def threshold_forward(x, threshold):
    """abs(ceil(x - threshold - 0.001)) elementwise via a tiled Pallas kernel."""
    orig_shape = x.shape
    total = x.size
    itemsize = jnp.dtype(x.dtype).itemsize
    thr = jnp.asarray([threshold], dtype=jnp.float32)

    cols = _pick_cols(total)
    if cols is not None:
        # Common path: pure metadata reshape, zero extra HBM traffic.
        x2d = x.reshape(total // cols, cols)
        block_rows = _pick_block_rows(x2d.shape[0], cols, itemsize)
        out2d = _threshold_2d(x2d, thr, block_rows=block_rows)
        return out2d.reshape(orig_shape)

    # Fallback (size not a multiple of 128): pad only to a whole 512-wide row
    # (< 512 extra elements); ragged row-blocks are still handled by masking.
    cols = 512
    rows = pl.cdiv(total, cols)
    pad = rows * cols - total
    x_flat = jnp.pad(x.reshape(-1), (0, pad))
    x2d = x_flat.reshape(rows, cols)
    block_rows = _pick_block_rows(rows, cols, itemsize)
    out2d = _threshold_2d(x2d, thr, block_rows=block_rows)
    return out2d.reshape(-1)[:total].reshape(orig_shape)


if __name__ == "__main__":
    key = jax.random.PRNGKey(0)
    threshold = 0.5

    ok = True

    # Primary case: small NCHW input consistent with a conv-style module.
    x = jax.random.normal(key, (2, 4, 16, 16), dtype=jnp.float32)
    out = jax.block_until_ready(threshold_forward(x, threshold))
    ref = jnp.abs(jnp.ceil(x - threshold - 0.001))
    ok &= out.shape == x.shape and bool(jnp.allclose(out, ref))

    # Size not divisible by 128 (exercises the minimal-pad fallback path).
    x2 = jax.random.normal(jax.random.PRNGKey(1), (3, 5, 33, 47), dtype=jnp.float32)
    out2 = jax.block_until_ready(threshold_forward(x2, threshold))
    ref2 = jnp.abs(jnp.ceil(x2 - threshold - 0.001))
    ok &= out2.shape == x2.shape and bool(jnp.allclose(out2, ref2))

    # Multi-block grid with a ragged (masked) last block, no padding needed.
    x3 = jax.random.normal(jax.random.PRNGKey(2), (2, 8, 128, 130), dtype=jnp.float32)
    out3 = jax.block_until_ready(threshold_forward(x3, threshold))
    ref3 = jnp.abs(jnp.ceil(x3 - threshold - 0.001))
    ok &= out3.shape == x3.shape and bool(jnp.allclose(out3, ref3))

    assert ok, "mismatch vs reference"
    print("KERNEL_OK")
</pallas_src>

<mosaic_0001>
module attributes {stable_mosaic.version = 11 : i64} {
  func.func @_threshold_kernel(%arg0: i32, %arg1: memref<1xf32, #tpu.memory_space<smem>>, %arg2: memref<1x2048xf32, #tpu.memory_space<vmem>>, %arg3: memref<1x2048xf32, #tpu.memory_space<vmem>>) attributes {dimension_semantics = [#tpu.dimension_semantics<parallel>], iteration_bounds = array<i64: 1>, scalar_prefetch = 1 : i64, scratch_operands = 0 : i64, tpu.core_type = #tpu.core_type<tc>, window_params = [{transform_indices = @transform_0, window_bounds = array<i64: 1, 2048>}, {transform_indices = @transform_1, window_bounds = array<i64: 1, 2048>}]} {
    %c0 = arith.constant 0 : index
    %c0_0 = arith.constant 0 : index
    %0 = vector.load %arg2[%c0, %c0_0] : memref<1x2048xf32, #tpu.memory_space<vmem>>, vector<1x2048xf32>
    %c0_1 = arith.constant 0 : index
    %1 = memref.load %arg1[%c0_1] : memref<1xf32, #tpu.memory_space<smem>>
    %2 = vector.broadcast %1 : f32 to vector<1x2048xf32>
    %3 = arith.subf %0, %2 : vector<1x2048xf32>
    %cst = arith.constant 1.000000e-03 : f32
    %4 = vector.broadcast %cst : f32 to vector<1x2048xf32>
    %5 = arith.subf %3, %4 : vector<1x2048xf32>
    %6 = math.ceil %5 : vector<1x2048xf32>
    %7 = math.absf %6 : vector<1x2048xf32>
    %c0_2 = arith.constant 0 : index
    %c0_3 = arith.constant 0 : index
    %8 = vector.load %arg3[%c0_2, %c0_3] : memref<1x2048xf32, #tpu.memory_space<vmem>>, vector<1x2048xf32>
    tpu.vector_store %arg3[%c0_2, %c0_3], %7 {strides = array<i32>} : memref<1x2048xf32, #tpu.memory_space<vmem>>, vector<1x2048xf32>,
    return
  }
  func.func @transform_0(%arg0: i32, %arg1: memref<1xf32, #tpu.memory_space<smem>>) -> (i32, i32) {
    %c0_i32 = arith.constant 0 : i32
    %c0_i32_0 = arith.constant 0 : i32
    return %arg0, %c0_i32 : i32, i32
  }
  func.func @transform_1(%arg0: i32, %arg1: memref<1xf32, #tpu.memory_space<smem>>) -> (i32, i32) {
    %c0_i32 = arith.constant 0 : i32
    %c0_i32_0 = arith.constant 0 : i32
    return %arg0, %c0_i32 : i32, i32
  }
}

</mosaic_0001>

<llo_original>
// kernel: _threshold_2d.1
$region0: #{_threshold_2d.1}
  #allocation0 [shape = 'u32[]', space=smem, size = 0x4, offset = 0x4, fixed_abs, tag = 'smem constant byte address 0x4 - core index']
  #allocation1 [shape = 'u32[144,128]{1,0:T(1,128)}', space=vmem, size = 0x12000, scoped, tag = 'internal scratch']
  #allocation2 [shape = 's32[1]{0}', space=sflag, size = 0x4, scoped, tag = 'scoped memory for _threshold_2d.1']
  #allocation3 [shape = 'f32[1]{0:T(128)S(6)}', space=smem, size = 0x200, scoped, tag = 'prefetched SMEM operand 0']
  %s0 = inlined_call_operand.<no memory space> [shape: f32[1], index: 0, kind: input, shape index: {}]
  %s1 = inlined_call_operand.hbm [shape: f32[1,2048], index: 1, kind: input, shape index: {}]
  %s2 = inlined_call_operand.hbm [shape: f32[1,2048], index: 2, kind: output, shape index: {}]
  %s3 = sld [smem:[#allocation0]]
  $region18: #{_threshold_2d.1} parent=0
    _
  %s5 = ssub.s32 1, %s3
  %s6 = scalar_select 0, %s5, %s3
  %7 = sst [smem:[#allocation3]] %s0
  $region1: #{_threshold_2d.1} parent=0
    #allocation4 [shape = 'u8[8192]{0}', space=vmem, size = 0x2000, scoped, tag = 'input window, operand 1, single buffered']
    #allocation5 [shape = 's32[1]{0}', space=sflag, size = 0x4, scoped, tag = 'scoped memory for _threshold_2d.1']
    #allocation6 [shape = 's32[1]{0}', space=sflag, size = 0x4, scoped, tag = 'scoped memory for _threshold_2d.1']
    #allocation7 [shape = 'u8[8192]{0}', space=vmem, size = 0x2000, scoped, tag = 'output window, operand 0, single buffered']
    %8 = vsyncpa [#allocation5], 0
    %9 = vsyncpa [#allocation6], 0
    // Predicated region
    $region2: #{_threshold_2d.1} parent=1 // pred_check
      _
    $region3: #{_threshold_2d.1} parent=1 // pred_check_branch
      %11 = sbr.rel (0) target = $region5
    $region4: #{_threshold_2d.1} parent=1 // pred_region
      %s13 = ssub.s32 256, 256
      %14 = vsyncadd [#allocation5], %s13
      %s16 = sshll.u32 [#allocation4], 4
      %s17 = int_to_ptr.vmem [resolvable:$true] %s16
      %19 = dma.hbm_to_vmem [thread:$0]  %s1, 256, %s17, [#allocation5]
    $region5: #{_threshold_2d.1} parent=1 // pred_fallthru
      _
    // Predicated region
    $region6: #{_threshold_2d.1} parent=1 // pred_check
      _
    $region7: #{_threshold_2d.1} parent=1 // pred_check_branch
      %21 = sbr.rel (0) target = $region9
    $region8: #{_threshold_2d.1} parent=1 // pred_region
      %22 = dma.done [#allocation5], 256
    $region9: #{_threshold_2d.1} parent=1 // pred_fallthru
      _
    %v23 = vld [vmem:[#allocation4] sm:$0xff]
    %v24 = vld [vmem:[#allocation4 + $0x8] sm:$0xff]
    %s25 = sld [smem:[#allocation3]]
    %v26 = vstv %s25
    %v27 = vsub.f32 %v23, %v26
    %v28 = vsub.f32 %v24, %v26
    %v29 = vsub.f32 %v27, 0.001
    %v30 = vsub.f32 %v28, 0.001
    %v31 = vceil.f32 %v29
    %v32 = vceil.f32 %v30
    %v33 = vand.u32 2147483647, %v31
    %v34 = vand.u32 2147483647, %v32
    %35 = vst [vmem:[#allocation7] sm:$0xff] %v33
    %36 = vst [vmem:[#allocation7 + $0x8] sm:$0xff] %v34
    // Predicated region
    $region10: #{_threshold_2d.1} parent=1 // pred_check
      _
    $region11: #{_threshold_2d.1} parent=1 // pred_check_branch
      %38 = sbr.rel (0) target = $region13
    $region12: #{_threshold_2d.1} parent=1 // pred_region
      %s40 = ssub.s32 256, 256
      %41 = vsyncadd [#allocation6], %s40
      %s43 = sshll.u32 [#allocation7], 4
      %s44 = int_to_ptr.vmem [resolvable:$true] %s43
      %46 = dma.vmem_to_hbm [thread:$0]  %s44, 256, %s2, [#allocation6]
    $region13: #{_threshold_2d.1} parent=1 // pred_fallthru
      _
    // Predicated region
    $region14: #{_threshold_2d.1} parent=1 // pred_check
      _
    $region15: #{_threshold_2d.1} parent=1 // pred_check_branch
      %48 = sbr.rel (0) target = $region17
    $region16: #{_threshold_2d.1} parent=1 // pred_region
      %49 = dma.done [#allocation6], 256
    $region17: #{_threshold_2d.1} parent=1 // pred_fallthru
      _
    %50 = vsyncpa [#allocation5], 1
    %51 = vsyncpa [#allocation6], 1

</llo_original>
